<compile_context>
chip_gen: v7x
topology: tpu7x:2x2x1
jax: 0.10.0
libtpu: 0.0.40
codegen_flags: <defaults>
</compile_context>

<pallas_src>
import functools

import jax
import jax.numpy as jnp
from jax.experimental import pallas as pl
from jax.experimental.pallas import tpu as pltpu


def _default_vmem_limit():
    try:
        cap = pltpu.get_tpu_info().vmem_capacity_bytes
    except Exception:
        cap = 128 * 1024 * 1024
    return int(min(48 * 1024 * 1024, cap // 2))


_VMEM_LIMIT = _default_vmem_limit()


# ------------------------------ small helpers -------------------------------

def _round_up(a, b):
    return (a + b - 1) // b * b


def _pad2(a, r, c):
    pr, pc = r - a.shape[0], c - a.shape[1]
    if pr == 0 and pc == 0:
        return a
    return jnp.pad(a, ((0, pr), (0, pc)))


def _gelu_exact(x):
    # matches torch.nn.GELU() default (erf based)
    return 0.5 * x * (1.0 + jax.lax.erf(x / jnp.sqrt(2.0).astype(x.dtype)))


# ------------------------- tiled linear (matmul) kernel ----------------------

def _linear_kernel(*refs, act, nk, has_ln, has_res):
    idx = 0
    x_ref = refs[idx]; idx += 1
    w_ref = refs[idx]; idx += 1
    b_ref = refs[idx]; idx += 1
    if has_ln:
        g_ref = refs[idx]; idx += 1
        be_ref = refs[idx]; idx += 1
    if has_res:
        r_ref = refs[idx]; idx += 1
        s_ref = refs[idx]; idx += 1
    o_ref = refs[idx]; idx += 1
    acc_ref = refs[idx]; idx += 1
    xn_ref = refs[idx] if has_ln else None

    @pl.when(pl.program_id(2) == 0)
    def _():
        acc_ref[...] = jnp.zeros_like(acc_ref)

    if has_ln:
        # LayerNorm of the (single) K block, computed once per row-tile and
        # cached in a bf16 VMEM scratch so it is not redone for every column
        # tile (j axis is marked "arbitrary" to make this legal).
        @pl.when(pl.program_id(1) == 0)
        def _():
            xv = x_ref[...].astype(jnp.float32)
            mu = jnp.mean(xv, axis=-1, keepdims=True)
            var = jnp.mean((xv - mu) ** 2, axis=-1, keepdims=True)
            xn_ref[...] = ((xv - mu) * jax.lax.rsqrt(var + 1e-5) * g_ref[...]
                           + be_ref[...]).astype(jnp.bfloat16)
        xop = xn_ref[...]
    else:
        xop = x_ref[...]

    acc_ref[...] += jnp.dot(xop, w_ref[...], preferred_element_type=jnp.float32)

    @pl.when(pl.program_id(2) == nk - 1)
    def _():
        y = acc_ref[...] + b_ref[...]
        if act == "gelu":
            y = _gelu_exact(y)
        elif act == "sigmoid":
            y = jax.nn.sigmoid(y)
        if has_res:
            y = r_ref[...].astype(jnp.float32) + s_ref[...] * y
        o_ref[...] = y.astype(o_ref.dtype)


def linear(x, w, b, act=None, residual=None, scale=None,
           ln_gamma=None, ln_beta=None, out_dtype=jnp.float32):
    """y = act(LN?(x) @ w + b); optional fused epilogue y = residual + scale*y."""
    M, K = x.shape
    N = w.shape[1]

    has_ln = ln_gamma is not None
    single_k = K <= 2048
    if has_ln and not single_k:
        x = layernorm(x, ln_gamma, ln_beta, out_dtype=jnp.bfloat16)
        has_ln = False

    tm = min(_round_up(M, 8), 512)
    tn = min(_round_up(N, 128), 512)
    if single_k:
        tk, Kp = K, K
    else:
        tk = 1024
        Kp = _round_up(K, tk)
    Mp = _round_up(M, tm)
    Np = _round_up(N, tn)
    nk = Kp // tk

    xp = _pad2(x.astype(jnp.bfloat16), Mp, Kp)
    wp = _pad2(w.astype(jnp.bfloat16), Kp, Np)
    bp = _pad2(b.reshape(1, N).astype(jnp.float32), 1, Np)

    ins = [xp, wp, bp]
    in_specs = [pl.BlockSpec((tm, tk), lambda i, j, k: (i, k)),
                pl.BlockSpec((tk, tn), lambda i, j, k: (k, j)),
                pl.BlockSpec((1, tn), lambda i, j, k: (0, j))]
    if has_ln:
        ins += [ln_gamma.reshape(1, K).astype(jnp.float32),
                ln_beta.reshape(1, K).astype(jnp.float32)]
        in_specs += [pl.BlockSpec((1, tk), lambda i, j, k: (0, k)),
                     pl.BlockSpec((1, tk), lambda i, j, k: (0, k))]
    has_res = residual is not None
    if has_res:
        ins += [_pad2(residual.astype(jnp.bfloat16), Mp, Np),
                _pad2(scale.reshape(1, N).astype(jnp.float32), 1, Np)]
        in_specs += [pl.BlockSpec((tm, tn), lambda i, j, k: (i, j)),
                     pl.BlockSpec((1, tn), lambda i, j, k: (0, j))]

    scratch = [pltpu.VMEM((tm, tn), jnp.float32)]
    if has_ln:
        scratch.append(pltpu.VMEM((tm, tk), jnp.bfloat16))

    sem = (("parallel", "arbitrary", "arbitrary") if has_ln
           else ("parallel", "parallel", "arbitrary"))

    out = pl.pallas_call(
        functools.partial(_linear_kernel, act=act, nk=nk,
                          has_ln=has_ln, has_res=has_res),
        grid=(Mp // tm, Np // tn, nk),
        in_specs=in_specs,
        out_specs=pl.BlockSpec((tm, tn), lambda i, j, k: (i, j)),
        out_shape=jax.ShapeDtypeStruct((Mp, Np), out_dtype),
        scratch_shapes=scratch,
        compiler_params=pltpu.CompilerParams(
            dimension_semantics=sem, vmem_limit_bytes=_VMEM_LIMIT),
    )(*ins)
    return out[:M, :N]


# --------------------------- layernorm kernels ------------------------------

def _layernorm_kernel(x_ref, g_ref, b_ref, o_ref):
    x = x_ref[...].astype(jnp.float32)
    mu = jnp.mean(x, axis=-1, keepdims=True)
    var = jnp.mean((x - mu) ** 2, axis=-1, keepdims=True)
    o_ref[...] = ((x - mu) * jax.lax.rsqrt(var + 1e-5) * g_ref[...]
                  + b_ref[...]).astype(o_ref.dtype)


def layernorm(x2d, g, b, out_dtype=jnp.float32):
    """Row-tiled LayerNorm (fallback path for very large D)."""
    M, D = x2d.shape
    tm = min(_round_up(M, 8), 512)
    Mp = _round_up(M, tm)
    xp = _pad2(x2d, Mp, D)
    out = pl.pallas_call(
        _layernorm_kernel,
        grid=(Mp // tm,),
        in_specs=[pl.BlockSpec((tm, D), lambda i: (i, 0)),
                  pl.BlockSpec((1, D), lambda i: (0, 0)),
                  pl.BlockSpec((1, D), lambda i: (0, 0))],
        out_specs=pl.BlockSpec((tm, D), lambda i: (i, 0)),
        out_shape=jax.ShapeDtypeStruct((Mp, D), out_dtype),
        compiler_params=pltpu.CompilerParams(
            dimension_semantics=("parallel",), vmem_limit_bytes=_VMEM_LIMIT),
    )(xp, g.reshape(1, D).astype(jnp.float32), b.reshape(1, D).astype(jnp.float32))
    return out[:M]


# ---------------------- fused (gate * tok -> LN -> ctx mean) -----------------

def _norm_ctx_kernel(tok_ref, gate_ref, g_ref, b_ref, ctx_ref):
    t = tok_ref[0].astype(jnp.float32) * gate_ref[0]                 # [S, D]
    mu = jnp.mean(t, axis=-1, keepdims=True)
    var = jnp.mean((t - mu) ** 2, axis=-1, keepdims=True)
    y = (t - mu) * jax.lax.rsqrt(var + 1e-5) * g_ref[...] + b_ref[...]
    ctx_ref[0] = jnp.mean(y, axis=0, keepdims=True)


def norm_ctx(tok, gate, g, b):
    """ctx = mean_seq(LayerNorm(gate * tok)).  Returns [B, 1, D] f32."""
    B, S, D = tok.shape
    return pl.pallas_call(
        _norm_ctx_kernel,
        grid=(B,),
        in_specs=[pl.BlockSpec((1, S, D), lambda bi: (bi, 0, 0)),
                  pl.BlockSpec((1, 1, D), lambda bi: (bi, 0, 0)),
                  pl.BlockSpec((1, D), lambda bi: (0, 0)),
                  pl.BlockSpec((1, D), lambda bi: (0, 0))],
        out_specs=pl.BlockSpec((1, 1, D), lambda bi: (bi, 0, 0)),
        out_shape=jax.ShapeDtypeStruct((B, 1, D), jnp.float32),
        compiler_params=pltpu.CompilerParams(
            dimension_semantics=("parallel",), vmem_limit_bytes=_VMEM_LIMIT),
    )(tok, gate,
      g.reshape(1, D).astype(jnp.float32), b.reshape(1, D).astype(jnp.float32))


# ----- fused spectral branch: gate*tok -> LN -> rDFT -> filter -> ModReLU ----
# -----                         -> irDFT -> residual + layer-scale        ----

def _spectral_kernel(mcos_ref, msin_ref, icos_ref, isin_ref, tok_ref, gate_ref,
                     g_ref, b_ref, filt_ref, fbias_ref, mbias_ref, ls_ref,
                     o_ref):
    gt = tok_ref[0].astype(jnp.float32) * gate_ref[0]                # [S, D]
    mu = jnp.mean(gt, axis=-1, keepdims=True)
    var = jnp.mean((gt - mu) ** 2, axis=-1, keepdims=True)
    x = (gt - mu) * jax.lax.rsqrt(var + 1e-5) * g_ref[...] + b_ref[...]

    # half-spectrum (rfft-style) DFT as two fp32 MXU matmuls
    xre = jnp.dot(mcos_ref[...], x, preferred_element_type=jnp.float32)   # [Fp, D]
    xim = jnp.dot(msin_ref[...], x, preferred_element_type=jnp.float32)

    f = filt_ref[0]                                                   # [1, D]
    fre = xre * f + fbias_ref[0]
    fim = xim * f

    # ModReLU with one EUP rsqrt (no sqrt / divides on the VALU path);
    # angle(0) == 0 matches torch (output = thr * (1, 0) at zero magnitude).
    sq = fre * fre + fim * fim
    inv = jax.lax.rsqrt(sq + 1e-30)
    mag = sq * inv
    thr = jnp.maximum(mag + mbias_ref[...], 0.0)
    pos = sq > 0.0
    rre = thr * jnp.where(pos, fre * inv, 1.0)
    rim = thr * jnp.where(pos, fim * inv, 0.0)

    # inverse rDFT as two accumulating fp32 matmuls (no concat / relayout)
    y = (jnp.dot(icos_ref[...], rre, preferred_element_type=jnp.float32)
         + jnp.dot(isin_ref[...], rim, preferred_element_type=jnp.float32))  # [S, D]
    o_ref[0] = (gt + ls_ref[...] * y).astype(o_ref.dtype)


def spectral_residual(tok, gate, g, b, mcos, msin, icos, isin,
                      eff_filter, eff_bias, mod_bias, ls):
    """gate*tok + ls * spectral_filter(LN(gate*tok)), one grid step per batch."""
    B, S, D = tok.shape
    Fp = mcos.shape[0]
    return pl.pallas_call(
        _spectral_kernel,
        grid=(B,),
        in_specs=[
            pl.BlockSpec((Fp, S), lambda bi: (0, 0)),                 # cos fwd (resident)
            pl.BlockSpec((Fp, S), lambda bi: (0, 0)),                 # -sin fwd (resident)
            pl.BlockSpec((S, Fp), lambda bi: (0, 0)),                 # cos inv (resident)
            pl.BlockSpec((S, Fp), lambda bi: (0, 0)),                 # -sin inv (resident)
            pl.BlockSpec((1, S, D), lambda bi: (bi, 0, 0)),           # tok (bf16)
            pl.BlockSpec((1, 1, D), lambda bi: (bi, 0, 0)),           # gate
            pl.BlockSpec((1, D), lambda bi: (0, 0)),                  # norm1 gamma
            pl.BlockSpec((1, D), lambda bi: (0, 0)),                  # norm1 beta
            pl.BlockSpec((1, 1, D), lambda bi: (bi, 0, 0)),           # eff filter
            pl.BlockSpec((1, 1, D), lambda bi: (bi, 0, 0)),           # eff bias
            pl.BlockSpec((1, D), lambda bi: (0, 0)),                  # modrelu bias
            pl.BlockSpec((1, D), lambda bi: (0, 0)),                  # layer scale 1
        ],
        out_specs=pl.BlockSpec((1, S, D), lambda bi: (bi, 0, 0)),
        out_shape=jax.ShapeDtypeStruct((B, S, D), jnp.bfloat16),
        compiler_params=pltpu.CompilerParams(
            dimension_semantics=("parallel",), vmem_limit_bytes=_VMEM_LIMIT),
    )(mcos, msin, icos, isin, tok, gate,
      g.reshape(1, D).astype(jnp.float32), b.reshape(1, D).astype(jnp.float32),
      eff_filter, eff_bias, mod_bias, ls)


def _dft_matrices(S, Fp):
    """Half-spectrum (rfft) DFT matrices in fp32, frequency axis padded to Fp."""
    F = S // 2 + 1
    k = jnp.arange(F, dtype=jnp.int32)
    n = jnp.arange(S, dtype=jnp.int32)
    # reduce k*n mod S before the float multiply for precision at large S
    ang = (2.0 * jnp.pi / S) * ((k[:, None] * n[None, :]) % S).astype(jnp.float32)
    cosf = jnp.cos(ang)
    sinf = jnp.sin(ang)                                              # [F, S]

    mcos = jnp.zeros((Fp, S), jnp.float32).at[:F].set(cosf)
    msin = jnp.zeros((Fp, S), jnp.float32).at[:F].set(-sinf)

    special = (k == 0)
    if S % 2 == 0:
        special = special | (k == S // 2)
    w = jnp.where(special, 1.0, 2.0) / S                             # rfft fold weights
    icos = jnp.zeros((S, Fp), jnp.float32).at[:, :F].set((cosf * w[:, None]).T)
    isin = jnp.zeros((S, Fp), jnp.float32).at[:, :F].set(-(sinf * w[:, None]).T)
    return mcos, msin, icos, isin


# ---------------------- spectral gating: gate values only --------------------

def _gate_kernel(tok_ref, g_ref, bt_ref, w1_ref, b1_ref, w2_ref, b2_ref, o_ref):
    t = tok_ref[0].astype(jnp.float32)                               # [S, D]
    mu = jnp.mean(t, axis=-1, keepdims=True)
    var = jnp.mean((t - mu) ** 2, axis=-1, keepdims=True)
    nx = (t - mu) * jax.lax.rsqrt(var + 1e-5) * g_ref[...] + bt_ref[...]
    ctx = jnp.mean(nx, axis=0, keepdims=True)                        # [1, D]
    h = jnp.dot(ctx.astype(jnp.bfloat16), w1_ref[...],
                preferred_element_type=jnp.float32) + b1_ref[...]
    h = _gelu_exact(h)
    gate = jnp.dot(h.astype(jnp.bfloat16), w2_ref[...],
                   preferred_element_type=jnp.float32) + b2_ref[...]
    o_ref[0] = jax.nn.sigmoid(gate)


def spectral_gate_values(tok, gg, gb, w1, b1, w2, b2):
    """Only the [B,1,D] gate is computed; the tok*gate multiply is fused into
    the next consumers of tok (norm_ctx / spectral_residual / head)."""
    B, S, D = tok.shape
    return pl.pallas_call(
        _gate_kernel,
        grid=(B,),
        in_specs=[pl.BlockSpec((1, S, D), lambda bi: (bi, 0, 0)),
                  pl.BlockSpec((1, D), lambda bi: (0, 0)),
                  pl.BlockSpec((1, D), lambda bi: (0, 0)),
                  pl.BlockSpec((D, D), lambda bi: (0, 0)),
                  pl.BlockSpec((1, D), lambda bi: (0, 0)),
                  pl.BlockSpec((D, D), lambda bi: (0, 0)),
                  pl.BlockSpec((1, D), lambda bi: (0, 0))],
        out_specs=pl.BlockSpec((1, 1, D), lambda bi: (bi, 0, 0)),
        out_shape=jax.ShapeDtypeStruct((B, 1, D), jnp.float32),
        compiler_params=pltpu.CompilerParams(
            dimension_semantics=("parallel",), vmem_limit_bytes=_VMEM_LIMIT),
    )(tok,
      gg.reshape(1, D).astype(jnp.float32), gb.reshape(1, D).astype(jnp.float32),
      w1.astype(jnp.bfloat16), b1.reshape(1, D).astype(jnp.float32),
      w2.astype(jnp.bfloat16), b2.reshape(1, D).astype(jnp.float32))


# ---------------- fused (encoder LN -> ViT LN -> classifier) head ------------

def _head_kernel(cls_ref, g1_ref, b1_ref, g2_ref, b2_ref, w_ref, hb_ref, o_ref):
    x = cls_ref[...].astype(jnp.float32)
    mu = jnp.mean(x, axis=-1, keepdims=True)
    var = jnp.mean((x - mu) ** 2, axis=-1, keepdims=True)
    x = (x - mu) * jax.lax.rsqrt(var + 1e-5) * g1_ref[...] + b1_ref[...]
    mu = jnp.mean(x, axis=-1, keepdims=True)
    var = jnp.mean((x - mu) ** 2, axis=-1, keepdims=True)
    x = (x - mu) * jax.lax.rsqrt(var + 1e-5) * g2_ref[...] + b2_ref[...]
    o_ref[...] = (jnp.dot(x.astype(jnp.bfloat16), w_ref[...],
                          preferred_element_type=jnp.float32) + hb_ref[...])


def classifier_head(cls_tok, g1, b1, g2, b2, w, b):
    # LayerNorm is row-wise, so applying the two final norms + head to the CLS
    # rows only is exactly equivalent to normalizing all tokens then slicing.
    B, D = cls_tok.shape
    C = w.shape[1]
    Cp = _round_up(C, 128)
    tn = min(Cp, 512)
    wp = _pad2(w.astype(jnp.bfloat16), D, Cp)
    bp = _pad2(b.reshape(1, C).astype(jnp.float32), 1, Cp)
    out = pl.pallas_call(
        _head_kernel,
        grid=(Cp // tn,),
        in_specs=[pl.BlockSpec((B, D), lambda j: (0, 0)),
                  pl.BlockSpec((1, D), lambda j: (0, 0)),
                  pl.BlockSpec((1, D), lambda j: (0, 0)),
                  pl.BlockSpec((1, D), lambda j: (0, 0)),
                  pl.BlockSpec((1, D), lambda j: (0, 0)),
                  pl.BlockSpec((D, tn), lambda j: (0, j)),
                  pl.BlockSpec((1, tn), lambda j: (0, j))],
        out_specs=pl.BlockSpec((B, tn), lambda j: (0, j)),
        out_shape=jax.ShapeDtypeStruct((B, Cp), jnp.float32),
        compiler_params=pltpu.CompilerParams(
            dimension_semantics=("parallel",), vmem_limit_bytes=_VMEM_LIMIT),
    )(cls_tok.astype(jnp.float32),
      g1.reshape(1, D).astype(jnp.float32), b1.reshape(1, D).astype(jnp.float32),
      g2.reshape(1, D).astype(jnp.float32), b2.reshape(1, D).astype(jnp.float32),
      wp, bp)
    return out[:, :C]


# ------------------------------- full forward --------------------------------

def fftnet_vit_forward(params, x, cfg):
    B, C, Hh, Ww = x.shape
    psz = cfg["patch_size"]
    D = cfg["dim"]
    Hp, Wp = Hh // psz, Ww // psz
    nP = Hp * Wp
    S = nP + 1

    F = S // 2 + 1
    Fp = max(_round_up(F, 16), 16)
    mcos, msin, icos, isin = _dft_matrices(S, Fp)

    # Conv2d(in, dim, k=psz, stride=psz) == im2col (glue) + Pallas matmul.
    patches = (x.reshape(B, C, Hp, psz, Wp, psz)
                 .transpose(0, 2, 4, 1, 3, 5)
                 .reshape(B * nP, C * psz * psz))
    emb = linear(patches, params["patch_w"], params["patch_b"]).reshape(B, nP, D)

    cls = jnp.broadcast_to(params["cls_token"], (B, 1, D))
    tok = (jnp.concatenate([cls, emb], axis=1)
           + params["pos_embed"]).astype(jnp.bfloat16)               # [B, S, D]

    # Gate of the previous layer's SpectralGating, applied lazily to tok.
    gate = jnp.ones((B, 1, D), jnp.float32)

    for lp in params["layers"]:
        # --- adaptive spectral filter branch ---
        ctx = norm_ctx(tok, gate, lp["norm1_g"], lp["norm1_b"])       # [B,1,D]
        h = linear(ctx.reshape(B, D), lp["ctx_w1"], lp["ctx_b1"],
                   act="gelu", out_dtype=jnp.bfloat16)
        mod = linear(h, lp["ctx_w2"], lp["ctx_b2"]).reshape(B, 2, D)
        eff_filter = (lp["base_filter"].reshape(1, D)
                      * (1.0 + mod[:, 0])).reshape(B, 1, D)
        eff_bias = (lp["base_bias"].reshape(1, D) + mod[:, 1]).reshape(B, 1, D)
        tok = spectral_residual(tok, gate, lp["norm1_g"], lp["norm1_b"],
                                mcos, msin, icos, isin,
                                eff_filter, eff_bias,
                                lp["modrelu_bias"].reshape(1, D),
                                lp["ls1"].reshape(1, D))              # bf16

        # --- MLP branch (LN fused into first matmul, residual+scale into second) ---
        x2 = tok.reshape(B * S, D)
        if D <= 2048:
            hmid = linear(x2, lp["mlp_w1"], lp["mlp_b1"], act="gelu",
                          ln_gamma=lp["norm2_g"], ln_beta=lp["norm2_b"],
                          out_dtype=jnp.bfloat16)
        else:
            xn2 = layernorm(x2, lp["norm2_g"], lp["norm2_b"],
                            out_dtype=jnp.bfloat16)
            hmid = linear(xn2, lp["mlp_w1"], lp["mlp_b1"], act="gelu",
                          out_dtype=jnp.bfloat16)
        tok = linear(hmid, lp["mlp_w2"], lp["mlp_b2"],
                     residual=x2, scale=lp["ls2"],
                     out_dtype=jnp.bfloat16).reshape(B, S, D)

        # --- spectral gating: compute gate only, apply lazily downstream ---
        gate = spectral_gate_values(tok, lp["g_norm_g"], lp["g_norm_b"],
                                    lp["gate_w1"], lp["gate_b1"],
                                    lp["gate_w2"], lp["gate_b2"])

    cls_out = tok[:, 0].astype(jnp.float32) * gate[:, 0]              # [B, D]
    logits = classifier_head(cls_out,
                             params["enc_norm_g"], params["enc_norm_b"],
                             params["vit_norm_g"], params["vit_norm_b"],
                             params["head_w"], params["head_b"])
    return logits


# ------------------------------ parameter init -------------------------------

def init_params(key, cfg):
    D = cfg["dim"]
    H = cfg["num_heads"]
    Dh = D // H
    mlp = cfg["mlp_ratio"]
    C = cfg["in_channels"]
    psz = cfg["patch_size"]
    nP = (cfg["img_size"] // psz) ** 2
    S = nP + 1

    def nrm(k, shape, std=0.02):
        return jax.random.normal(k, shape, dtype=jnp.float32) * std

    keys = iter(jax.random.split(key, 8 + cfg["depth"] * 8))

    params = {
        "patch_w": nrm(next(keys), (C * psz * psz, D)),
        "patch_b": jnp.zeros((D,), jnp.float32),
        "cls_token": nrm(next(keys), (1, 1, D)),
        "pos_embed": nrm(next(keys), (1, S, D)),
        "enc_norm_g": jnp.ones((D,), jnp.float32),
        "enc_norm_b": jnp.zeros((D,), jnp.float32),
        "vit_norm_g": jnp.ones((D,), jnp.float32),
        "vit_norm_b": jnp.zeros((D,), jnp.float32),
        "head_w": nrm(next(keys), (D, cfg["num_classes"])),
        "head_b": jnp.zeros((cfg["num_classes"],), jnp.float32),
        "layers": [],
    }

    for _ in range(cfg["depth"]):
        lp = {
            "norm1_g": jnp.ones((D,), jnp.float32),
            "norm1_b": jnp.zeros((D,), jnp.float32),
            "norm2_g": jnp.ones((D,), jnp.float32),
            "norm2_b": jnp.zeros((D,), jnp.float32),
            "base_filter": 1.0 + nrm(next(keys), (H, Dh), std=0.1),
            "base_bias": jnp.zeros((H, Dh), jnp.float32),
            "modrelu_bias": jnp.zeros((H, Dh), jnp.float32),
            "ctx_w1": nrm(next(keys), (D, D * mlp)),
            "ctx_b1": jnp.zeros((D * mlp,), jnp.float32),
            "ctx_w2": nrm(next(keys), (D * mlp, 2 * H * Dh)),
            "ctx_b2": jnp.zeros((2 * H * Dh,), jnp.float32),
            "mlp_w1": nrm(next(keys), (D, D * mlp)),
            "mlp_b1": jnp.zeros((D * mlp,), jnp.float32),
            "mlp_w2": nrm(next(keys), (D * mlp, D)),
            "mlp_b2": jnp.zeros((D,), jnp.float32),
            "ls1": 1e-5 * jnp.ones((D,), jnp.float32),
            "ls2": 1e-5 * jnp.ones((D,), jnp.float32),
            "g_norm_g": jnp.ones((D,), jnp.float32),
            "g_norm_b": jnp.zeros((D,), jnp.float32),
            "gate_w1": nrm(next(keys), (D, D)),
            "gate_b1": jnp.zeros((D,), jnp.float32),
            "gate_w2": nrm(next(keys), (D, D)),
            "gate_b2": jnp.zeros((D,), jnp.float32),
        }
        params["layers"].append(lp)
    return params


# ---------------------------------- main -------------------------------------

if __name__ == "__main__":
    cfg = dict(
        img_size=16,
        patch_size=8,
        in_channels=4,
        num_classes=10,
        dim=32,
        depth=2,
        num_heads=4,
        mlp_ratio=4,
    )
    key = jax.random.PRNGKey(0)
    k_x, k_p = jax.random.split(key)
    x = jax.random.normal(
        k_x, (2, cfg["in_channels"], cfg["img_size"], cfg["img_size"]),
        dtype=jnp.float32)
    params = init_params(k_p, cfg)

    logits = fftnet_vit_forward(params, x, cfg)
    logits = jax.block_until_ready(logits)
    assert logits.shape == (2, cfg["num_classes"])
    assert bool(jnp.all(jnp.isfinite(logits)))
    # TODO(synk): im2col rearrange, cls/pos-embed concat and the tiny per-batch
    # filter-modulation elementwise math remain plain-JAX glue.
    print("KERNEL_OK")
</pallas_src>

<mosaic_0001>
module attributes {stable_mosaic.version = 11 : i64} {
  func.func @_linear_kernel(%arg0: i32, %arg1: i32, %arg2: i32, %arg3: memref<8x256xbf16, #tpu.memory_space<vmem>>, %arg4: memref<256x128xbf16, #tpu.memory_space<vmem>>, %arg5: memref<1x128xf32, #tpu.memory_space<vmem>>, %arg6: memref<8x128xf32, #tpu.memory_space<vmem>>, %arg7: memref<8x128xf32, #tpu.memory_space<vmem>>) attributes {dimension_semantics = [#tpu.dimension_semantics<parallel>, #tpu.dimension_semantics<parallel>, #tpu.dimension_semantics<arbitrary>], iteration_bounds = array<i64: 1, 1, 1>, scalar_prefetch = 0 : i64, scratch_operands = 1 : i64, tpu.core_type = #tpu.core_type<tc>, window_params = [{transform_indices = @transform_0, window_bounds = array<i64: 8, 256>}, {transform_indices = @transform_1, window_bounds = array<i64: 256, 128>}, {transform_indices = @transform_2, window_bounds = array<i64: 1, 128>}, {transform_indices = @transform_3, window_bounds = array<i64: 8, 128>}]} {
    %c0_i32 = arith.constant 0 : i32
    %0 = arith.cmpi eq, %arg2, %c0_i32 : i32
    %1 = arith.extui %0 : i1 to i32
    %c0_i32_0 = arith.constant 0 : i32
    %2 = arith.cmpi ne, %1, %c0_i32_0 : i32
    scf.if %2 {
      %cst_10 = arith.constant 0.000000e+00 : f32
      %12 = vector.broadcast %cst_10 : f32 to vector<8x128xf32>
      %c0_11 = arith.constant 0 : index
      %c0_12 = arith.constant 0 : index
      %13 = vector.load %arg7[%c0_11, %c0_12] : memref<8x128xf32, #tpu.memory_space<vmem>>, vector<8x128xf32>
      tpu.vector_store %arg7[%c0_11, %c0_12], %12 {strides = array<i32>} : memref<8x128xf32, #tpu.memory_space<vmem>>, vector<8x128xf32>,
    } else {
    }
    %c0 = arith.constant 0 : index
    %c0_1 = arith.constant 0 : index
    %3 = vector.load %arg3[%c0, %c0_1] : memref<8x256xbf16, #tpu.memory_space<vmem>>, vector<8x256xbf16>
    %c0_2 = arith.constant 0 : index
    %c0_3 = arith.constant 0 : index
    %4 = vector.load %arg7[%c0_2, %c0_3] : memref<8x128xf32, #tpu.memory_space<vmem>>, vector<8x128xf32>
    %c0_4 = arith.constant 0 : index
    %c0_5 = arith.constant 0 : index
    %5 = vector.load %arg4[%c0_4, %c0_5] : memref<256x128xbf16, #tpu.memory_space<vmem>>, vector<256x128xbf16>
    %cst = arith.constant dense<0.000000e+00> : vector<8x128xf32>
    %6 = tpu.matmul %3, %5, %cst {dimension_numbers = #tpu.dot_dimension_numbers<[1], [0], [0], [1], [0, 0, 1, 1], [], []>} : vector<8x256xbf16>, vector<256x128xbf16>, vector<8x128xf32> -> vector<8x128xf32>
    %7 = arith.addf %4, %6 : vector<8x128xf32>
    %c0_6 = arith.constant 0 : index
    %c0_7 = arith.constant 0 : index
    %8 = vector.load %arg7[%c0_6, %c0_7] : memref<8x128xf32, #tpu.memory_space<vmem>>, vector<8x128xf32>
    tpu.vector_store %arg7[%c0_6, %c0_7], %7 {strides = array<i32>} : memref<8x128xf32, #tpu.memory_space<vmem>>, vector<8x128xf32>,
    %c0_i32_8 = arith.constant 0 : i32
    %9 = arith.cmpi eq, %arg2, %c0_i32_8 : i32
    %10 = arith.extui %9 : i1 to i32
    %c0_i32_9 = arith.constant 0 : i32
    %11 = arith.cmpi ne, %10, %c0_i32_9 : i32
    scf.if %11 {
      %c0_10 = arith.constant 0 : index
      %c0_11 = arith.constant 0 : index
      %12 = vector.load %arg7[%c0_10, %c0_11] : memref<8x128xf32, #tpu.memory_space<vmem>>, vector<8x128xf32>
      %c0_12 = arith.constant 0 : index
      %c0_13 = arith.constant 0 : index
      %13 = vector.load %arg5[%c0_12, %c0_13] : memref<1x128xf32, #tpu.memory_space<vmem>>, vector<1x128xf32>
      %14 = vector.broadcast %13 : vector<1x128xf32> to vector<8x128xf32>
      %15 = arith.addf %12, %14 : vector<8x128xf32>
      %c0_14 = arith.constant 0 : index
      %c0_15 = arith.constant 0 : index
      %16 = vector.load %arg6[%c0_14, %c0_15] : memref<8x128xf32, #tpu.memory_space<vmem>>, vector<8x128xf32>
      tpu.vector_store %arg6[%c0_14, %c0_15], %15 {strides = array<i32>} : memref<8x128xf32, #tpu.memory_space<vmem>>, vector<8x128xf32>,
    } else {
    }
    return
  }
  func.func @transform_0(%arg0: i32, %arg1: i32, %arg2: i32) -> (i32, i32) {
    %c0_i32 = arith.constant 0 : i32
    return %arg0, %arg2 : i32, i32
  }
  func.func @transform_1(%arg0: i32, %arg1: i32, %arg2: i32) -> (i32, i32) {
    %c0_i32 = arith.constant 0 : i32
    return %arg2, %arg1 : i32, i32
  }
  func.func @transform_2(%arg0: i32, %arg1: i32, %arg2: i32) -> (i32, i32) {
    %c0_i32 = arith.constant 0 : i32
    %c0_i32_0 = arith.constant 0 : i32
    return %c0_i32, %arg1 : i32, i32
  }
  func.func @transform_3(%arg0: i32, %arg1: i32, %arg2: i32) -> (i32, i32) {
    %c0_i32 = arith.constant 0 : i32
    return %arg0, %arg1 : i32, i32
  }
}

</mosaic_0001>

<llo_original>
// kernel: tpu_custom_call.1
$region0: #{tpu_custom_call.1}
  #allocation0 [shape = 'u32[]', space=smem, size = 0x4, offset = 0x4, fixed_abs, tag = 'smem constant byte address 0x4 - core index']
  #allocation1 [shape = 'u32[144,128]{1,0:T(1,128)}', space=vmem, size = 0x12000, scoped, tag = 'internal scratch']
  #allocation2 [shape = 'f32[8,128]{1,0:T(8,128)}', space=vmem, size = 0x1000, scoped, tag = 'scratch operand']
  %s0 = inlined_call_operand.hbm [shape: bf16[8,256], index: 0, kind: input, shape index: {}]
  %s1 = inlined_call_operand.hbm [shape: bf16[256,128], index: 1, kind: input, shape index: {}]
  %s2 = inlined_call_operand.vmem [shape: f32[1,128], index: 2, kind: input, shape index: {}]
  %s3 = inlined_call_operand.hbm [shape: f32[8,128], index: 3, kind: output, shape index: {}]
  %s4 = sld [smem:[#allocation0]]
  $region38: #{tpu_custom_call.1} parent=0
    _
  %s6 = ssub.s32 1, %s4
  %s7 = scalar_select 0, %s6, %s4
  $region1: #{tpu_custom_call.1} parent=0
    #allocation3 [shape = 'u8[4096]{0}', space=vmem, size = 0x1000, scoped, tag = 'input window, operand 0, single buffered']
    #allocation4 [shape = 's32[1]{0}', space=sflag, size = 0x4, scoped, tag = 'scoped memory for tpu_custom_call.1']
    #allocation5 [shape = 's32[1]{0}', space=sflag, size = 0x4, scoped, tag = 'scoped memory for tpu_custom_call.1']
    #allocation6 [shape = 'u8[65536]{0}', space=vmem, size = 0x10000, scoped, tag = 'input window, operand 1, single buffered']
    #allocation7 [shape = 's32[1]{0}', space=sflag, size = 0x4, scoped, tag = 'scoped memory for tpu_custom_call.1']
    #allocation8 [shape = 'u8[4096]{0}', space=vmem, size = 0x1000, scoped, tag = 'output window, operand 0, single buffered']
    %8 = vsyncpa [#allocation4], 0
    %9 = vsyncpa [#allocation7], 0
    %10 = vsyncpa [#allocation5], 0
    // Predicated region
    $region2: #{tpu_custom_call.1} parent=1 // pred_check
      _
    $region3: #{tpu_custom_call.1} parent=1 // pred_check_branch
      %12 = sbr.rel (0) target = $region5
    $region4: #{tpu_custom_call.1} parent=1 // pred_region
      %s14 = ssub.s32 128, 128
      %15 = vsyncadd [#allocation4], %s14
      %s17 = sshll.u32 [#allocation3], 4
      %s18 = int_to_ptr.vmem [resolvable:$true] %s17
      %20 = dma.hbm_to_vmem [thread:$0]  %s0, 128, %s18, [#allocation4]
    $region5: #{tpu_custom_call.1} parent=1 // pred_fallthru
      _
    // Predicated region
    $region6: #{tpu_custom_call.1} parent=1 // pred_check
      _
    $region7: #{tpu_custom_call.1} parent=1 // pred_check_branch
      %22 = sbr.rel (0) target = $region9
    $region8: #{tpu_custom_call.1} parent=1 // pred_region
      %s24 = ssub.s32 2048, 2048
      %25 = vsyncadd [#allocation7], %s24
      %s26 = sshll.u32 [#allocation6], 4
      %s27 = int_to_ptr.vmem [resolvable:$true] %s26
      %32 = dma.hbm_to_vmem [thread:$0]  %s1, 2048, %s27, [#allocation7], 64, 64, 4
    $region9: #{tpu_custom_call.1} parent=1 // pred_fallthru
      _
    // Predicated region
    $region10: #{tpu_custom_call.1} parent=1 // pred_check
      _
    $region11: #{tpu_custom_call.1} parent=1 // pred_check_branch
      %34 = sbr.rel (0) target = $region13
    $region12: #{tpu_custom_call.1} parent=1 // pred_region
      _
    $region13: #{tpu_custom_call.1} parent=1 // pred_fallthru
      _
    // Predicated region
    $region14: #{tpu_custom_call.1} parent=1 // pred_check
      _
    $region15: #{tpu_custom_call.1} parent=1 // pred_check_branch
      %36 = sbr.rel (0) target = $region17
    $region16: #{tpu_custom_call.1} parent=1 // pred_region
      %37 = dma.done [#allocation4], 128
    $region17: #{tpu_custom_call.1} parent=1 // pred_fallthru
      _
    // Predicated region
    $region18: #{tpu_custom_call.1} parent=1 // pred_check
      _
    $region19: #{tpu_custom_call.1} parent=1 // pred_check_branch
      %39 = sbr.rel (0) target = $region21
    $region20: #{tpu_custom_call.1} parent=1 // pred_region
      %40 = dma.done [#allocation7], 2048
    $region21: #{tpu_custom_call.1} parent=1 // pred_fallthru
      _
    %p42 = scmp.eq.s32.totalorder 0, 0
    // Predicated region
    $region22: #{tpu_custom_call.1} parent=1 // pred_check
      %p43 = pneg %p42
    $region23: #{tpu_custom_call.1} parent=1 // pred_check_branch
      %45 = sbr.rel (%p43) target = $region25
    $region24: #{tpu_custom_call.1} parent=1 // pred_region
      %46 = vst [vmem:[#allocation2] sm:$0xff] 0.0
    $region25: #{tpu_custom_call.1} parent=1 // pred_fallthru
      _
    %v47 = vld [vmem:[#allocation3] sm:$0xff]
    %v48 = vld [vmem:[#allocation2] sm:$0xff]
    %v49 = vld [vmem:[#allocation6] sm:$0xf]
    %v50 = vld [vmem:[#allocation6 + $0x4] sm:$0xf]
    %v51 = vld [vmem:[#allocation6 + $0x8] sm:$0xf]
    %v52 = vld [vmem:[#allocation6 + $0xc] sm:$0xf]
    %v53 = vld [vmem:[#allocation6 + $0x10] sm:$0xf]
    %v54 = vld [vmem:[#allocation6 + $0x14] sm:$0xf]
    %v55 = vld [vmem:[#allocation6 + $0x18] sm:$0xf]
    %v56 = vld [vmem:[#allocation6 + $0x1c] sm:$0xf]
    %v57 = vld [vmem:[#allocation6 + $0x20] sm:$0xf]
    %v58 = vld [vmem:[#allocation6 + $0x24] sm:$0xf]
    %v59 = vld [vmem:[#allocation6 + $0x28] sm:$0xf]
    %v60 = vld [vmem:[#allocation6 + $0x2c] sm:$0xf]
    %v61 = vld [vmem:[#allocation6 + $0x30] sm:$0xf]
    %v62 = vld [vmem:[#allocation6 + $0x34] sm:$0xf]
    %v63 = vld [vmem:[#allocation6 + $0x38] sm:$0xf]
    %v64 = vld [vmem:[#allocation6 + $0x3c] sm:$0xf]
    %v65 = vld [vmem:[#allocation6 + $0x40] sm:$0xf]
    %v66 = vld [vmem:[#allocation6 + $0x44] sm:$0xf]
    %v67 = vld [vmem:[#allocation6 + $0x48] sm:$0xf]
    %v68 = vld [vmem:[#allocation6 + $0x4c] sm:$0xf]
    %v69 = vld [vmem:[#allocation6 + $0x50] sm:$0xf]
    %v70 = vld [vmem:[#allocation6 + $0x54] sm:$0xf]
    %v71 = vld [vmem:[#allocation6 + $0x58] sm:$0xf]
    %v72 = vld [vmem:[#allocation6 + $0x5c] sm:$0xf]
    %v73 = vld [vmem:[#allocation6 + $0x60] sm:$0xf]
    %v74 = vld [vmem:[#allocation6 + $0x64] sm:$0xf]
    %v75 = vld [vmem:[#allocation6 + $0x68] sm:$0xf]
    %v76 = vld [vmem:[#allocation6 + $0x6c] sm:$0xf]
    %v77 = vld [vmem:[#allocation6 + $0x70] sm:$0xf]
    %v78 = vld [vmem:[#allocation6 + $0x74] sm:$0xf]
    %v79 = vld [vmem:[#allocation6 + $0x78] sm:$0xf]
    %v80 = vld [vmem:[#allocation6 + $0x7c] sm:$0xf]
    %v82 = vunpack.c.l.b16 %v47
    %v83 = vunpack.c.h.b16 %v47
    %v84 = vpack.c.b16 %v82, %v82
    %v85 = vpack.c.b16 %v83, %v83
    %v120 = vunpack.c.l.b16 %v49
    %v121 = vunpack.c.l.b16 %v50
    %v122 = vunpack.c.l.b16 %v51
    %v123 = vunpack.c.l.b16 %v52
    %v124 = vunpack.c.l.b16 %v53
    %v125 = vunpack.c.l.b16 %v54
    %v126 = vunpack.c.l.b16 %v55
    %v127 = vunpack.c.l.b16 %v56
    %v128 = vunpack.c.l.b16 %v57
    %v129 = vunpack.c.l.b16 %v58
    %v130 = vunpack.c.l.b16 %v59
    %v131 = vunpack.c.l.b16 %v60
    %v132 = vunpack.c.l.b16 %v61
    %v133 = vunpack.c.l.b16 %v62
    %v134 = vunpack.c.l.b16 %v63
    %v135 = vunpack.c.l.b16 %v64
    %v136 = vunpack.c.l.b16 %v65
    %v137 = vunpack.c.l.b16 %v66
    %v138 = vunpack.c.l.b16 %v67
    %v139 = vunpack.c.l.b16 %v68
    %v140 = vunpack.c.l.b16 %v69
    %v141 = vunpack.c.l.b16 %v70
    %v142 = vunpack.c.l.b16 %v71
    %v143 = vunpack.c.l.b16 %v72
    %v144 = vunpack.c.l.b16 %v73
    %v145 = vunpack.c.l.b16 %v74
    %v146 = vunpack.c.l.b16 %v75
    %v147 = vunpack.c.l.b16 %v76
    %v148 = vunpack.c.l.b16 %v77
    %v149 = vunpack.c.l.b16 %v78
    %v150 = vunpack.c.l.b16 %v79
    %v151 = vunpack.c.l.b16 %v80
    %v152 = vpack.c.b16 %v121, %v120
    %v153 = vpack.c.b16 %v123, %v122
    %v154 = vpack.c.b16 %v125, %v124
    %v155 = vpack.c.b16 %v127, %v126
    %v156 = vpack.c.b16 %v129, %v128
    %v157 = vpack.c.b16 %v131, %v130
    %v158 = vpack.c.b16 %v133, %v132
    %v159 = vpack.c.b16 %v135, %v134
    %v160 = vpack.c.b16 %v137, %v136
    %v161 = vpack.c.b16 %v139, %v138
    %v162 = vpack.c.b16 %v141, %v140
    %v163 = vpack.c.b16 %v143, %v142
    %v164 = vpack.c.b16 %v145, %v144
    %v165 = vpack.c.b16 %v147, %v146
    %v166 = vpack.c.b16 %v149, %v148
    %v167 = vpack.c.b16 %v151, %v150
    %184 = vmatprep.subr.bf16.mxu0 0
    %185 = vmatpush1.bf16.msra.mxu0 %v152
    %186 = vmatprep.subr.bf16.mxu0 0
    %187 = vmatpush1.bf16.msra.mxu0 %v153
    %188 = vmatprep.subr.bf16.mxu0 0
    %189 = vmatpush1.bf16.msra.mxu0 %v154
    %190 = vmatprep.subr.bf16.mxu0 0
    %191 = vmatpush1.bf16.msra.mxu0 %v155
    %192 = vmatprep.subr.bf16.mxu0 0
    %193 = vmatpush1.bf16.msra.mxu0 %v156
    %194 = vmatprep.subr.bf16.mxu0 0
    %195 = vmatpush1.bf16.msra.mxu0 %v157
    %196 = vmatprep.subr.bf16.mxu0 0
    %197 = vmatpush1.bf16.msra.mxu0 %v158
    %198 = vmatprep.subr.bf16.mxu0 0
    %199 = vmatpush1.bf16.msra.mxu0 %v159
    %200 = vmatprep.subr.bf16.mxu0 0
    %201 = vmatpush1.bf16.msra.mxu0 %v160
    %202 = vmatprep.subr.bf16.mxu0 0
    %203 = vmatpush1.bf16.msra.mxu0 %v161
    %204 = vmatprep.subr.bf16.mxu0 0
    %205 = vmatpush1.bf16.msra.mxu0 %v162
    %206 = vmatprep.subr.bf16.mxu0 0
    %207 = vmatpush1.bf16.msra.mxu0 %v163
    %208 = vmatprep.subr.bf16.mxu0 0
    %209 = vmatpush1.bf16.msra.mxu0 %v164
    %210 = vmatprep.subr.bf16.mxu0 0
    %211 = vmatpush1.bf16.msra.mxu0 %v165
    %212 = vmatprep.subr.bf16.mxu0 0
    %213 = vmatpush1.bf16.msra.mxu0 %v166
    %214 = vmatprep.subr.bf16.mxu0 0
    %215 = vmatpush1.bf16.msra.mxu0 %v167
    %216 = vmatprep.mubr.bf16.mxu0 %v85
    %217 = vmatmul.mubr.bf16.gmra.mrb[0].mxu0 %v84
    %v218 = vpop.f32.mrb[0].mxu0
    %v219 = vadd.f32 0.0, %v218
    %v220 = vpop.f32.mrb[0].mxu0
    %v221 = vpop.f32.mrb[0].mxu0
    %v222 = vpop.f32.mrb[0].mxu0
    %223 = vdwg.mxu0
    %v224 = vadd.f32 %v48, %v219
    %225 = vst [vmem:[#allocation2] sm:$0xff] %v224
    // Predicated region
    $region26: #{tpu_custom_call.1} parent=1 // pred_check
      %p226 = pneg %p42
    $region27: #{tpu_custom_call.1} parent=1 // pred_check_branch
      %228 = sbr.rel (%p226) target = $region29
    $region28: #{tpu_custom_call.1} parent=1 // pred_region
      %v229 = vld [vmem:[#allocation2] sm:$0xff]
      %v230 = vld [vmem:[%s2] sm:$0x1]
      %v232 = vlaneseq
      %v233 = vshrl.u32 %v232, 7
      %v234 = vsub.s32 0, %v233
      %v235 = vrot.slane %v230, %v234
      %v237 = vadd.f32 %v229, %v235
      %238 = vst [vmem:[#allocation8] sm:$0xff] %v237
    $region29: #{tpu_custom_call.1} parent=1 // pred_fallthru
      _
    // Predicated region
    $region30: #{tpu_custom_call.1} parent=1 // pred_check
      _
    $region31: #{tpu_custom_call.1} parent=1 // pred_check_branch
      %240 = sbr.rel (0) target = $region33
    $region32: #{tpu_custom_call.1} parent=1 // pred_region
      %s242 = ssub.s32 128, 128
      %243 = vsyncadd [#allocation5], %s242
      %s245 = sshll.u32 [#allocation8], 4
      %s246 = int_to_ptr.vmem [resolvable:$true] %s245
      %248 = dma.vmem_to_hbm [thread:$0]  %s246, 128, %s3, [#allocation5]
    $region33: #{tpu_custom_call.1} parent=1 // pred_fallthru
      _
    // Predicated region
    $region34: #{tpu_custom_call.1} parent=1 // pred_check
      _
    $region35: #{tpu_custom_call.1} parent=1 // pred_check_branch
      %250 = sbr.rel (0) target = $region37
    $region36: #{tpu_custom_call.1} parent=1 // pred_region
      %251 = dma.done [#allocation5], 128
    $region37: #{tpu_custom_call.1} parent=1 // pred_fallthru
      _
    %252 = vsyncpa [#allocation4], 1
    %253 = vsyncpa [#allocation7], 1
    %254 = vsyncpa [#allocation5], 1

</llo_original>
